<compile_context>
chip_gen: v7x
topology: tpu7x:2x2x1
jax: 0.10.0
libtpu: 0.0.40
codegen_flags: <defaults>
</compile_context>

<pallas_src>
import jax
import jax.numpy as jnp
from jax import lax
from jax.experimental import pallas as pl
from jax.experimental.pallas import tpu as pltpu


# ---------------------------------------------------------------------------
# Fused kernel, one grid step = one mask tile (bn rows):
#   p_tile  = mask_tile @ W_eff + b                      (bn, CL)   -- MXU
#   sal_blk += contract_bn(p_tile, mask_tile)            (CL, HW)   -- MXU,
#              lane dim = HW (>=128) so stores are unmasked / lane-dense.
# The saliency block stays resident across the reduction ('arbitrary') axis.
# ---------------------------------------------------------------------------
def _rise_fused_kernel(mask_ref, weff_ref, b_ref, sal_ref):
    i = pl.program_id(1)                      # inner reduction axis over mask tiles

    @pl.when(i == 0)
    def _init():
        sal_ref[...] = jnp.zeros_like(sal_ref)

    mask = mask_ref[...]                                            # (bn, HW)
    # Classifier on the masked image; channel contraction pre-folded into W_eff.
    p = jnp.dot(mask, weff_ref[...],
                preferred_element_type=jnp.float32) + b_ref[...]    # (bn, CL) f32
    # sal[cl, hw] += sum_n p[n, cl] * mask[n, hw]  — contract the bn axis
    # directly (no explicit transpose / XLU relayout of p).
    sal_ref[0] += lax.dot_general(
        p.astype(mask.dtype), mask,
        dimension_numbers=(((0,), (0,)), ((), ())),
        preferred_element_type=jnp.float32)                         # (CL, HW)


def _round_up(a, m):
    return (a + m - 1) // m * m


def rise_forward(x, masks, w, b, p1, *, normalize=True, block_n=256,
                 num_partials=2, compute_dtype=jnp.float32):
    """x: (1, C, H, W), masks: (N, 1, H, W), w: (C*H*W, CL), b: (CL,)."""
    _, C, H, W = x.shape
    N = masks.shape[0]
    HW = H * W
    CL = w.shape[1]
    itm = jnp.dtype(compute_dtype).itemsize

    # --- wrapper-side folds (tiny: O(C*HW*CL)) ------------------------------
    # W_eff[hw, cl] = sum_c x[c, hw] * W[c, hw, cl]; 1/(N*p1) folded into W_eff/b.
    scale = (1.0 / (N * p1)) if normalize else 1.0
    x_flat = x.reshape(C, HW).astype(jnp.float32)
    w3 = w.reshape(C, HW, CL).astype(jnp.float32)
    w_eff = (jnp.einsum("ch,chl->hl", x_flat, w3) * scale).astype(compute_dtype)
    b2 = b.reshape(1, CL).astype(jnp.float32) * scale

    # --- adaptive mask-tile size --------------------------------------------
    # (a) VMEM cap: double-buffered mask tile must stay well under budget.
    mask_tile_budget = 16 << 20                      # bytes for BOTH buffers
    bn_vmem_cap = max(8, (mask_tile_budget // (2 * HW * itm)) // 8 * 8)
    # (b) don't over-pad: at most one tile per partial when N is small.
    bn_work_cap = _round_up(max(1, -(-N // num_partials)), 8)
    bn = max(8, min(_round_up(block_n, 8), bn_vmem_cap, bn_work_cap))

    # Masks: (N, HW); zero-pad N so it tiles evenly. Zero mask rows contribute
    # exactly 0 to sal (the second matmul multiplies p by the zero mask row).
    masks_flat = masks.reshape(N, HW).astype(compute_dtype)
    n_inner = max(1, -(-N // (bn * num_partials)))
    n_pad = bn * num_partials * n_inner
    if n_pad != N:
        masks_flat = jnp.pad(masks_flat, ((0, n_pad - N), (0, 0)))

    # --- explicit VMEM budget (keeps v7x's 64 MiB / 32 MiB scoped default safe)
    est = (2 * bn * HW * itm          # double-buffered mask tiles
           + 2 * HW * max(CL, 128) * itm   # W_eff (resident, lane-padded)
           + 2 * 128 * 4              # bias (lane-padded)
           + 2 * CL * HW * 4          # resident saliency accumulator block
           + bn * max(CL, 128) * 4)   # p tile (lane-padded)
    vmem_bytes = int(min(max(2 * est, 32 << 20), 64 << 20))

    cost = pl.CostEstimate(
        flops=4 * n_pad * HW * CL,
        transcendentals=0,
        bytes_accessed=n_pad * HW * itm + HW * CL * itm
        + num_partials * CL * HW * 4)

    partial = pl.pallas_call(
        _rise_fused_kernel,
        out_shape=jax.ShapeDtypeStruct((num_partials, CL, HW), jnp.float32),
        grid=(num_partials, n_inner),
        in_specs=[
            pl.BlockSpec((bn, HW), lambda o, i: (o * n_inner + i, 0)),
            pl.BlockSpec((HW, CL), lambda o, i: (0, 0)),
            pl.BlockSpec((1, CL), lambda o, i: (0, 0)),
        ],
        out_specs=pl.BlockSpec((1, CL, HW), lambda o, i: (o, 0, 0)),
        compiler_params=pltpu.CompilerParams(
            dimension_semantics=("parallel", "arbitrary"),
            vmem_limit_bytes=vmem_bytes),
        cost_estimate=cost,
    )(masks_flat, w_eff, b2)

    sal = jnp.sum(partial, axis=0)            # tiny (num_partials, CL, HW) reduce
    return sal.reshape(CL, H, W)


def rise_forward_ref(x, masks, w, b, p1, normalize=True):
    """Pure-JAX reference mirroring the PyTorch forward."""
    _, C, H, W = x.shape
    N = masks.shape[0]
    CL = w.shape[1]
    stack = masks * x                                   # (N, C, H, W)
    p = stack.reshape(N, C * H * W) @ w + b             # model(stack)
    sal = p.T @ masks.reshape(N, H * W)                 # (CL, HW)
    sal = sal.reshape(CL, H, W)
    if normalize:
        sal = sal / N / p1
    return sal


if __name__ == "__main__":
    key = jax.random.PRNGKey(0)
    k_x, k_m, k_w, k_b = jax.random.split(key, 4)

    # Small toy sizes; N deliberately NOT a tile multiple to exercise padding.
    N, C, H, W, CL = 500, 4, 16, 16, 8
    p1 = 0.5

    x = jax.random.normal(k_x, (1, C, H, W), dtype=jnp.float32)
    # Deterministic synthetic RISE masks (Bernoulli(p1) floats), shape (N,1,H,W).
    masks = (jax.random.uniform(k_m, (N, 1, H, W)) < p1).astype(jnp.float32)
    # Deterministic synthetic classifier: Flatten -> Linear(C*H*W, CL).
    w = 0.02 * jax.random.normal(k_w, (C * H * W, CL), dtype=jnp.float32)
    b = 0.01 * jax.random.normal(k_b, (CL,), dtype=jnp.float32)

    sal_expected = rise_forward_ref(x, masks, w, b, p1)

    # f32 path (exact check).
    sal = jax.block_until_ready(rise_forward(x, masks, w, b, p1))
    assert sal.shape == (CL, H, W)
    assert jnp.allclose(sal, sal_expected, atol=1e-4, rtol=1e-4)

    # bf16 MXU-input path (v6e/v7x recommendation): masks are exact in bf16,
    # W_eff rounds, so compare loosely against the f32 reference.
    sal_bf16 = jax.block_until_ready(
        rise_forward(x, masks, w, b, p1, compute_dtype=jnp.bfloat16))
    max_err = float(jnp.max(jnp.abs(sal_bf16 - sal_expected)))
    assert max_err <= 5e-2 * float(jnp.max(jnp.abs(sal_expected))) + 1e-6

    # Exercise the un-normalized branch of the original forward as well.
    sal_un = jax.block_until_ready(rise_forward(x, masks, w, b, p1,
                                                normalize=False))
    sal_un_ref = rise_forward_ref(x, masks, w, b, p1, normalize=False)
    assert jnp.allclose(sal_un, sal_un_ref, atol=1e-2, rtol=1e-4)

    print("KERNEL_OK")
</pallas_src>

<mosaic_0001>
module attributes {stable_mosaic.version = 11 : i64} {
  func.func @_rise_fused_kernel(%arg0: i32, %arg1: i32, %arg2: memref<256x256xf32, #tpu.memory_space<vmem>>, %arg3: memref<256x8xf32, #tpu.memory_space<vmem>>, %arg4: memref<1x8xf32, #tpu.memory_space<vmem>>, %arg5: memref<1x8x256xf32, #tpu.memory_space<vmem>>) attributes {dimension_semantics = [#tpu.dimension_semantics<parallel>, #tpu.dimension_semantics<arbitrary>], iteration_bounds = array<i64: 2, 1>, scalar_prefetch = 0 : i64, scratch_operands = 0 : i64, tpu.core_type = #tpu.core_type<tc>, window_params = [{transform_indices = @transform_0, window_bounds = array<i64: 256, 256>}, {pipeline_mode = #tpu.pipeline_mode<synchronous>, transform_indices = @transform_1, window_bounds = array<i64: 256, 8>}, {pipeline_mode = #tpu.pipeline_mode<synchronous>, transform_indices = @transform_2, window_bounds = array<i64: 1, 8>}, {transform_indices = @transform_3, window_bounds = array<i64: 1, 8, 256>}]} {
    %c0_i32 = arith.constant 0 : i32
    %0 = arith.cmpi eq, %arg1, %c0_i32 : i32
    %1 = arith.extui %0 : i1 to i32
    %c0_i32_0 = arith.constant 0 : i32
    %2 = arith.cmpi ne, %1, %c0_i32_0 : i32
    scf.if %2 {
      %cst_13 = arith.constant 0.000000e+00 : f32
      %16 = vector.broadcast %cst_13 : f32 to vector<1x8x256xf32>
      %c0_14 = arith.constant 0 : index
      %c0_15 = arith.constant 0 : index
      %c0_16 = arith.constant 0 : index
      %17 = vector.load %arg5[%c0_14, %c0_15, %c0_16] : memref<1x8x256xf32, #tpu.memory_space<vmem>>, vector<1x8x256xf32>
      tpu.vector_store %arg5[%c0_14, %c0_15, %c0_16], %16 {strides = array<i32>} : memref<1x8x256xf32, #tpu.memory_space<vmem>>, vector<1x8x256xf32>,
    } else {
    }
    %c0 = arith.constant 0 : index
    %c0_1 = arith.constant 0 : index
    %3 = vector.load %arg2[%c0, %c0_1] : memref<256x256xf32, #tpu.memory_space<vmem>>, vector<256x256xf32>
    %c0_2 = arith.constant 0 : index
    %c0_3 = arith.constant 0 : index
    %4 = vector.load %arg3[%c0_2, %c0_3] : memref<256x8xf32, #tpu.memory_space<vmem>>, vector<256x8xf32>
    %cst = arith.constant dense<0.000000e+00> : vector<256x8xf32>
    %5 = tpu.matmul %3, %4, %cst {dimension_numbers = #tpu.dot_dimension_numbers<[1], [0], [0], [1], [0, 0, 1, 1], [], []>} : vector<256x256xf32>, vector<256x8xf32>, vector<256x8xf32> -> vector<256x8xf32>
    %c0_4 = arith.constant 0 : index
    %c0_5 = arith.constant 0 : index
    %6 = vector.load %arg4[%c0_4, %c0_5] : memref<1x8xf32, #tpu.memory_space<vmem>>, vector<1x8xf32>
    %7 = vector.broadcast %6 : vector<1x8xf32> to vector<256x8xf32>
    %8 = arith.addf %5, %7 : vector<256x8xf32>
    %c0_6 = arith.constant 0 : index
    %c0_7 = arith.constant 0 : index
    %c0_8 = arith.constant 0 : index
    %9 = vector.load %arg5[%c0_6, %c0_7, %c0_8] : memref<1x8x256xf32, #tpu.memory_space<vmem>>, vector<1x8x256xf32>
    %10 = vector.shape_cast %9 : vector<1x8x256xf32> to vector<8x256xf32>
    %cst_9 = arith.constant dense<0.000000e+00> : vector<8x256xf32>
    %11 = tpu.matmul %8, %3, %cst_9 {dimension_numbers = #tpu.dot_dimension_numbers<[0], [0], [1], [1], [0, 1, 1, 1], [], []>} : vector<256x8xf32>, vector<256x256xf32>, vector<8x256xf32> -> vector<8x256xf32>
    %12 = arith.addf %10, %11 : vector<8x256xf32>
    %c0_10 = arith.constant 0 : index
    %c0_11 = arith.constant 0 : index
    %c0_12 = arith.constant 0 : index
    %13 = vector.load %arg5[%c0_10, %c0_11, %c0_12] : memref<1x8x256xf32, #tpu.memory_space<vmem>>, vector<1x8x256xf32>
    %14 = vector.shape_cast %13 : vector<1x8x256xf32> to vector<8x256xf32>
    %15 = vector.shape_cast %12 : vector<8x256xf32> to vector<1x8x256xf32>
    tpu.vector_store %arg5[%c0_10, %c0_11, %c0_12], %15 {strides = array<i32>} : memref<1x8x256xf32, #tpu.memory_space<vmem>>, vector<1x8x256xf32>,
    return
  }
  func.func @transform_0(%arg0: i32, %arg1: i32) -> (i32, i32) {
    %c1_i32 = arith.constant 1 : i32
    %0 = arith.muli %arg0, %c1_i32 : i32
    %1 = arith.addi %0, %arg1 : i32
    %c0_i32 = arith.constant 0 : i32
    %c0_i32_0 = arith.constant 0 : i32
    return %1, %c0_i32 : i32, i32
  }
  func.func @transform_1(%arg0: i32, %arg1: i32) -> (i32, i32) {
    %c0_i32 = arith.constant 0 : i32
    %c0_i32_0 = arith.constant 0 : i32
    %c0_i32_1 = arith.constant 0 : i32
    return %c0_i32, %c0_i32_0 : i32, i32
  }
  func.func @transform_2(%arg0: i32, %arg1: i32) -> (i32, i32) {
    %c0_i32 = arith.constant 0 : i32
    %c0_i32_0 = arith.constant 0 : i32
    %c0_i32_1 = arith.constant 0 : i32
    return %c0_i32, %c0_i32_0 : i32, i32
  }
  func.func @transform_3(%arg0: i32, %arg1: i32) -> (i32, i32, i32) {
    %c0_i32 = arith.constant 0 : i32
    %c0_i32_0 = arith.constant 0 : i32
    %c0_i32_1 = arith.constant 0 : i32
    return %arg0, %c0_i32, %c0_i32_0 : i32, i32, i32
  }
}

</mosaic_0001>

<llo_original>
// kernel: tpu_custom_call.1
$region0: #{tpu_custom_call.1}
  #allocation0 [shape = 'u32[]', space=smem, size = 0x4, offset = 0x4, fixed_abs, tag = 'smem constant byte address 0x4 - core index']
  #allocation1 [shape = 'u32[144,128]{1,0:T(1,128)}', space=vmem, size = 0x12000, scoped, tag = 'internal scratch']
  %s0 = inlined_call_operand.hbm [shape: f32[512,256], index: 0, kind: input, shape index: {}]
  %s1 = inlined_call_operand.vmem [shape: f32[256,8], index: 1, kind: input, shape index: {}]
  %s2 = inlined_call_operand.vmem [shape: f32[1,8], index: 2, kind: input, shape index: {}]
  %s3 = inlined_call_operand.hbm [shape: f32[2,8,256], index: 3, kind: output, shape index: {}]
  %s4 = sld [smem:[#allocation0]]
  $region53: #{tpu_custom_call.1} parent=0
    _
  %s6 = ssub.s32 1, %s4
  %s7 = scalar_select 0, %s6, %s4
  $region1: #{tpu_custom_call.1} parent=0
    #allocation2 [shape = 'u8[524288]{0}', space=vmem, size = 0x80000, scoped, tag = 'input window, operand 0']
    #allocation3 [shape = 's32[2]{0}', space=sflag, size = 0x8, scoped, tag = 'scoped memory for tpu_custom_call.1']
    #allocation4 [shape = 's32[2]{0}', space=sflag, size = 0x8, scoped, tag = 'scoped memory for tpu_custom_call.1']
    #allocation5 [shape = 'u8[16384]{0}', space=vmem, size = 0x4000, scoped, tag = 'output window, operand 0']
    %8 = vsyncpa [#allocation3], 0
    %s9 = scalar_lea.sflag [#allocation3], 1
    %10 = vsyncpa %s9, 0
    %11 = vsyncpa [#allocation4], 0
    %s12 = scalar_lea.sflag [#allocation4], 1
    %13 = vsyncpa %s12, 0
    loop: start=0, step=1, limit=4
    $region2: #{tpu_custom_call.1} parent=1 // loop_pre_header
      _
    $region3: #{tpu_custom_call.1} parent=1 // loop_header
      %s15 = sphi 0, %s19
      %p16 = scmp.ge.s32.totalorder %s15, 4
      %s22 = sphi 0, %s34
      %s23 = sphi 0, %s30
      %s24 = sphi 0, %s22
      %s25 = sphi 0, %s23
      %s26 = sphi 0, %s24
      %s27 = sphi 0, %s25
      %s39 = sphi 0, %s41
      %s42 = sphi 0, %s39
      %s43 = sphi 0, %s42
      %s59 = sphi 0, %s43
      %s63 = sphi 0, %s63
      %s65 = sphi 0, %s63
      %s66 = sphi 0, %s65
      %s80 = sphi 0, %s66
      %s84 = sphi 0, %s84
      %s86 = sphi 0, %s84
      %s87 = sphi 0, %s86
      %s101 = sphi 0, %s87
      %s107 = sphi 0, %s109
      %s110 = sphi 0, %s107
      %s111 = sphi 0, %s110
      %s127 = sphi 0, %s111
    $region4: #{tpu_custom_call.1} parent=1 // loop_header_branch
      %18 = sbr.rel (%p16) target = $region8
    $region5: #{tpu_custom_call.1} parent=1 // loop_body
      %s20 = ssub.s32 %s15, 1
      %s21 = ssub.s32 %s15, 2
      %s28 = sadd.s32 1, %s23
      %p29 = scmp.ge.s32.totalorder %s28, 1
      %s30 = scalar_select %p29, 0, %s28
      %s31 = sadd.s32 1, %s22
      %s32 = scalar_select %p29, %s31, %s22
      %p33 = scmp.ge.s32.totalorder %s32, 2
      %s34 = scalar_select %p33, 0, %s32
      %s35 = sadd.s32 %s22, %s23
      %s36 = sadd.s32 %s34, %s30
      %s37 = ssub.s32 %s35, %s36
      %p38 = scmp.eq.s32.totalorder %s37, 0
      %s40 = sadd.s32 %s39, 1
      %s41 = scalar_select %p38, %s39, %s40
      %p44 = pneg %p38
      %p45 = scmp.eq.s32.totalorder %s15, 1
      %p46 = por %p44, %p45
      %p47 = scmp.ne.s32.totalorder %s39, %s42
      %p48 = scmp.eq.s32.totalorder %s15, 0
      %p49 = por %p47, %p48
      %p50 = scmp.ne.s32.totalorder %s39, %s42
      %p51 = scmp.eq.s32.totalorder %s20, 1
      %p52 = por %p50, %p51
      %p53 = scmp.ne.s32.totalorder %s42, %s43
      %p54 = scmp.eq.s32.totalorder %s20, 0
      %p55 = por %p53, %p54
      %p56 = scmp.ne.s32.totalorder %s42, %s43
      %p57 = scmp.eq.s32.totalorder %s21, 1
      %p58 = por %p56, %p57
      %p60 = scmp.ne.s32.totalorder %s43, %s59
      %p61 = scmp.eq.s32.totalorder %s21, 0
      %p62 = por %p60, %p61
      %s64 = sadd.s32 %s63, 1
      %p67 = scmp.eq.s32.totalorder %s15, 1
      %p68 = scmp.ne.s32.totalorder %s63, %s65
      %p69 = scmp.eq.s32.totalorder %s15, 0
      %p70 = por %p68, %p69
      %p71 = scmp.ne.s32.totalorder %s63, %s65
      %p72 = scmp.eq.s32.totalorder %s20, 1
      %p73 = por %p71, %p72
      %p74 = scmp.ne.s32.totalorder %s65, %s66
      %p75 = scmp.eq.s32.totalorder %s20, 0
      %p76 = por %p74, %p75
      %p77 = scmp.ne.s32.totalorder %s65, %s66
      %p78 = scmp.eq.s32.totalorder %s21, 1
      %p79 = por %p77, %p78
      %p81 = scmp.ne.s32.totalorder %s66, %s80
      %p82 = scmp.eq.s32.totalorder %s21, 0
      %p83 = por %p81, %p82
      %s85 = sadd.s32 %s84, 1
      %p88 = scmp.eq.s32.totalorder %s15, 1
      %p89 = scmp.ne.s32.totalorder %s84, %s86
      %p90 = scmp.eq.s32.totalorder %s15, 0
      %p91 = por %p89, %p90
      %p92 = scmp.ne.s32.totalorder %s84, %s86
      %p93 = scmp.eq.s32.totalorder %s20, 1
      %p94 = por %p92, %p93
      %p95 = scmp.ne.s32.totalorder %s86, %s87
      %p96 = scmp.eq.s32.totalorder %s20, 0
      %p97 = por %p95, %p96
      %p98 = scmp.ne.s32.totalorder %s86, %s87
      %p99 = scmp.eq.s32.totalorder %s21, 1
      %p100 = por %p98, %p99
      %p102 = scmp.ne.s32.totalorder %s87, %s101
      %p103 = scmp.eq.s32.totalorder %s21, 0
      %p104 = por %p102, %p103
      %s105 = ssub.s32 %s22, %s34
      %p106 = scmp.eq.s32.totalorder %s105, 0
      %s108 = sadd.s32 %s107, 1
      %s109 = scalar_select %p106, %s107, %s108
      %p112 = pneg %p106
      %p113 = scmp.eq.s32.totalorder %s15, 1
      %p114 = por %p112, %p113
      %p115 = scmp.ne.s32.totalorder %s107, %s110
      %p116 = scmp.eq.s32.totalorder %s15, 0
      %p117 = por %p115, %p116
      %p118 = scmp.ne.s32.totalorder %s107, %s110
      %p119 = scmp.eq.s32.totalorder %s20, 1
      %p120 = por %p118, %p119
      %p121 = scmp.ne.s32.totalorder %s110, %s111
      %p122 = scmp.eq.s32.totalorder %s20, 0
      %p123 = por %p121, %p122
      %p124 = scmp.ne.s32.totalorder %s110, %s111
      %p125 = scmp.eq.s32.totalorder %s21, 1
      %p126 = por %p124, %p125
      %p128 = scmp.ne.s32.totalorder %s111, %s127
      %p129 = scmp.eq.s32.totalorder %s21, 0
      %p130 = por %p128, %p129
      %p131 = scmp.le.s32.totalorder 1, %s15
      %p132 = scmp.lt.s32.totalorder %s15, 3
      %p133 = pnand %p131, %p132
      %p134 = pneg %p133
      // Predicated region
      $region9: #{tpu_custom_call.1} parent=5 // pred_check
        _
      $region10: #{tpu_custom_call.1} parent=5 // pred_check_branch
        %136 = sbr.rel (%p133) target = $region12
      $region11: #{tpu_custom_call.1} parent=5 // pred_region
        %s137 = ssub.s32 %s15, 1
        // Predicated region
        $region13: #{tpu_custom_call.1} parent=11 // pred_check
          %p138 = pneg %p76
        $region14: #{tpu_custom_call.1} parent=11 // pred_check_branch
          %140 = sbr.rel (%p138) target = $region16
        $region15: #{tpu_custom_call.1} parent=11 // pred_region
          _
        $region16: #{tpu_custom_call.1} parent=11 // pred_fallthru
          _
        // Predicated region
        $region17: #{tpu_custom_call.1} parent=11 // pred_check
          %p141 = pneg %p97
        $region18: #{tpu_custom_call.1} parent=11 // pred_check_branch
          %143 = sbr.rel (%p141) target = $region20
        $region19: #{tpu_custom_call.1} parent=11 // pred_region
          _
        $region20: #{tpu_custom_call.1} parent=11 // pred_fallthru
          _
      $region12: #{tpu_custom_call.1} parent=5 // pred_fallthru
        _
      %p144 = scmp.lt.s32.totalorder %s15, 2
      // Predicated region
      $region21: #{tpu_custom_call.1} parent=5 // pred_check
        %p145 = pneg %p144
      $region22: #{tpu_custom_call.1} parent=5 // pred_check_branch
        %147 = sbr.rel (%p145) target = $region24
      $region23: #{tpu_custom_call.1} parent=5 // pred_region
        // Predicated region
        $region25: #{tpu_custom_call.1} parent=23 // pred_check
          %p148 = pneg %p49
        $region26: #{tpu_custom_call.1} parent=23 // pred_check_branch
          %150 = sbr.rel (%p148) target = $region28
        $region27: #{tpu_custom_call.1} parent=23 // pred_region
          %s151 = sand.u32 %s39, 1
          %s152 = scalar_lea.sflag [#allocation3], %s151
          %s153 = sand.u32 %s39, 1
          %s154 = smul.addr %s153, 512
          %s155 = scalar_lea.vmem [#allocation2], %s154
          %s156 = sadd.s32 %s22, %s23
          %s157 = smul.u32 32, %s156
          %s159 = ssub.s32 8192, 8192
          %160 = vsyncadd %s152, %s159
          %s161 = smul.addr %s157, 2
          %s162 = smul.addr %s161, 128
          %s163 = scalar_lea.hbm %s0, %s162
          %s164 = sshll.u32 %s155, 4
          %s165 = int_to_ptr.vmem [resolvable:$true] %s164
          %170 = dma.hbm_to_vmem [thread:$0]  %s163, 8192, %s165, %s152, 256, 256, 16
        $region28: #{tpu_custom_call.1} parent=23 // pred_fallthru
          _
      $region24: #{tpu_custom_call.1} parent=5 // pred_fallthru
        _
      %p171 = scmp.le.s32.totalorder 1, %s15
      %p172 = scmp.lt.s32.totalorder %s15, 3
      %p173 = pnand %p171, %p172
      %p174 = pneg %p173
      // Predicated region
      $region29: #{tpu_custom_call.1} parent=5 // pred_check
        _
      $region30: #{tpu_custom_call.1} parent=5 // pred_check_branch
        %176 = sbr.rel (%p173) target = $region32
      $region31: #{tpu_custom_call.1} parent=5 // pred_region
        %s177 = ssub.s32 %s15, 1
        %s178 = sand.u32 %s42, 1
        %s179 = scalar_lea.sflag [#allocation3], %s178
        %s180 = sand.u32 %s42, 1
        %s181 = smul.addr %s180, 512
        %s182 = scalar_lea.vmem [#allocation2], %s181
        // Predicated region
        $region33: #{tpu_custom_call.1} parent=31 // pred_check
          %p183 = pneg %p55
        $region34: #{tpu_custom_call.1} parent=31 // pred_check_branch
          %185 = sbr.rel (%p183) target = $region36
        $region35: #{tpu_custom_call.1} parent=31 // pred_region
          %186 = dma.done %s179, 8192
        $region36: #{tpu_custom_call.1} parent=31 // pred_fallthru
          _
        %s187 = sand.u32 %s42, 1
        %s188 = scalar_lea.sflag [#allocation3], %s187
        %s189 = sand.u32 %s42, 1
        %s190 = smul.addr %s189, 512
        %s191 = scalar_lea.vmem [#allocation2], %s190
        %p192 = pneg %p55
        %p193 = pneg %p52
        %p194 = pneg %p76
        %p195 = pneg %p73
        %p196 = pneg %p97
        %p197 = pneg %p94
        %p198 = pneg %p123
        %p199 = pneg %p120
        %s200 = sand.u32 %s110, 1
        %s201 = scalar_lea.sflag [#allocation4], %s200
        %s202 = sand.u32 %s110, 1
        %s203 = smul.addr %s202, 16
        %s204 = scalar_lea.vmem [#allocation5], %s203
        %s205 = sadd.s32 %s24, %s25
        %s206 = smul.u32 32, %s205
        %p207 = scmp.eq.s32.totalorder %s25, 0
        // Predicated region
        $region37: #{tpu_custom_call.1} parent=31 // pred_check
          %p208 = pneg %p207
        $region38: #{tpu_custom_call.1} parent=31 // pred_check_branch
          %210 = sbr.rel (%p208) target = $region40
        $region39: #{tpu_custom_call.1} parent=31 // pred_region
          %211 = vst [vmem:[%s204] sm:$0xff] 0.0
          %212 = vst [vmem:[%s204 + $0x8] sm:$0xff] 0.0
        $region40: #{tpu_custom_call.1} parent=31 // pred_fallthru
          _
        %v213 = vld [vmem:[%s182] sm:$0xff]
        %v214 = vld [vmem:[%s182 + $0x8] sm:$0xff]
        %v215 = vld [vmem:[%s182 + $0x10] sm:$0xff]
        %v216 = vld [vmem:[%s182 + $0x18] sm:$0xff]
        %v217 = vld [vmem:[%s182 + $0x20] sm:$0xff]
        %v218 = vld [vmem:[%s182 + $0x28] sm:$0xff]
        %v219 = vld [vmem:[%s182 + $0x30] sm:$0xff]
        %v220 = vld [vmem:[%s182 + $0x38] sm:$0xff]
        %v221 = vld [vmem:[%s182 + $0x40] sm:$0xff]
        %v222 = vld [vmem:[%s182 + $0x48] sm:$0xff]
        %v223 = vld [vmem:[%s182 + $0x50] sm:$0xff]
        %v224 = vld [vmem:[%s182 + $0x58] sm:$0xff]
        %v225 = vld [vmem:[%s182 + $0x60] sm:$0xff]
        %v226 = vld [vmem:[%s182 + $0x68] sm:$0xff]
        %v227 = vld [vmem:[%s182 + $0x70] sm:$0xff]
        %v228 = vld [vmem:[%s182 + $0x78] sm:$0xff]
        %v229 = vld [vmem:[%s182 + $0x80] sm:$0xff]
        %v230 = vld [vmem:[%s182 + $0x88] sm:$0xff]
        %v231 = vld [vmem:[%s182 + $0x90] sm:$0xff]
        %v232 = vld [vmem:[%s182 + $0x98] sm:$0xff]
        %v233 = vld [vmem:[%s182 + $0xa0] sm:$0xff]
        %v234 = vld [vmem:[%s182 + $0xa8] sm:$0xff]
        %v235 = vld [vmem:[%s182 + $0xb0] sm:$0xff]
        %v236 = vld [vmem:[%s182 + $0xb8] sm:$0xff]
        %v237 = vld [vmem:[%s182 + $0xc0] sm:$0xff]
        %v238 = vld [vmem:[%s182 + $0xc8] sm:$0xff]
        %v239 = vld [vmem:[%s182 + $0xd0] sm:$0xff]
        %v240 = vld [vmem:[%s182 + $0xd8] sm:$0xff]
        %v241 = vld [vmem:[%s182 + $0xe0] sm:$0xff]
        %v242 = vld [vmem:[%s182 + $0xe8] sm:$0xff]
        %v243 = vld [vmem:[%s182 + $0xf0] sm:$0xff]
        %v244 = vld [vmem:[%s182 + $0xf8] sm:$0xff]
        %v245 = vld [vmem:[%s182 + $0x100] sm:$0xff]
        %v246 = vld [vmem:[%s182 + $0x108] sm:$0xff]
        %v247 = vld [vmem:[%s182 + $0x110] sm:$0xff]
        %v248 = vld [vmem:[%s182 + $0x118] sm:$0xff]
        %v249 = vld [vmem:[%s182 + $0x120] sm:$0xff]
        %v250 = vld [vmem:[%s182 + $0x128] sm:$0xff]
        %v251 = vld [vmem:[%s182 + $0x130] sm:$0xff]
        %v252 = vld [vmem:[%s182 + $0x138] sm:$0xff]
        %v253 = vld [vmem:[%s182 + $0x140] sm:$0xff]
        %v254 = vld [vmem:[%s182 + $0x148] sm:$0xff]
        %v255 = vld [vmem:[%s182 + $0x150] sm:$0xff]
        %v256 = vld [vmem:[%s182 + $0x158] sm:$0xff]
        %v257 = vld [vmem:[%s182 + $0x160] sm:$0xff]
        %v258 = vld [vmem:[%s182 + $0x168] sm:$0xff]
        %v259 = vld [vmem:[%s182 + $0x170] sm:$0xff]
        %v260 = vld [vmem:[%s182 + $0x178] sm:$0xff]
        %v261 = vld [vmem:[%s182 + $0x180] sm:$0xff]
        %v262 = vld [vmem:[%s182 + $0x188] sm:$0xff]
        %v263 = vld [vmem:[%s182 + $0x190] sm:$0xff]
        %v264 = vld [vmem:[%s182 + $0x198] sm:$0xff]
        %v265 = vld [vmem:[%s182 + $0x1a0] sm:$0xff]
        %v266 = vld [vmem:[%s182 + $0x1a8] sm:$0xff]
        %v267 = vld [vmem:[%s182 + $0x1b0] sm:$0xff]
        %v268 = vld [vmem:[%s182 + $0x1b8] sm:$0xff]
        %v269 = vld [vmem:[%s182 + $0x1c0] sm:$0xff]
        %v270 = vld [vmem:[%s182 + $0x1c8] sm:$0xff]
        %v271 = vld [vmem:[%s182 + $0x1d0] sm:$0xff]
        %v272 = vld [vmem:[%s182 + $0x1d8] sm:$0xff]
        %v273 = vld [vmem:[%s182 + $0x1e0] sm:$0xff]
        %v274 = vld [vmem:[%s182 + $0x1e8] sm:$0xff]
        %v275 = vld [vmem:[%s182 + $0x1f0] sm:$0xff]
        %v276 = vld [vmem:[%s182 + $0x1f8] sm:$0xff]
        %v277 = vld [vmem:[%s1] sm:$0xff]
        %v278 = vld [vmem:[%s1 + $0x8] sm:$0xff]
        %v279 = vld [vmem:[%s1 + $0x10] sm:$0xff]
        %v280 = vld [vmem:[%s1 + $0x18] sm:$0xff]
        %v281 = vld [vmem:[%s1 + $0x20] sm:$0xff]
        %v282 = vld [vmem:[%s1 + $0x28] sm:$0xff]
        %v283 = vld [vmem:[%s1 + $0x30] sm:$0xff]
        %v284 = vld [vmem:[%s1 + $0x38] sm:$0xff]
        %v285 = vld [vmem:[%s1 + $0x40] sm:$0xff]
        %v286 = vld [vmem:[%s1 + $0x48] sm:$0xff]
        %v287 = vld [vmem:[%s1 + $0x50] sm:$0xff]
        %v288 = vld [vmem:[%s1 + $0x58] sm:$0xff]
        %v289 = vld [vmem:[%s1 + $0x60] sm:$0xff]
        %v290 = vld [vmem:[%s1 + $0x68] sm:$0xff]
        %v291 = vld [vmem:[%s1 + $0x70] sm:$0xff]
        %v292 = vld [vmem:[%s1 + $0x78] sm:$0xff]
        %v293 = vld [vmem:[%s1 + $0x80] sm:$0xff]
        %v294 = vld [vmem:[%s1 + $0x88] sm:$0xff]
        %v295 = vld [vmem:[%s1 + $0x90] sm:$0xff]
        %v296 = vld [vmem:[%s1 + $0x98] sm:$0xff]
        %v297 = vld [vmem:[%s1 + $0xa0] sm:$0xff]
        %v298 = vld [vmem:[%s1 + $0xa8] sm:$0xff]
        %v299 = vld [vmem:[%s1 + $0xb0] sm:$0xff]
        %v300 = vld [vmem:[%s1 + $0xb8] sm:$0xff]
        %v301 = vld [vmem:[%s1 + $0xc0] sm:$0xff]
        %v302 = vld [vmem:[%s1 + $0xc8] sm:$0xff]
        %v303 = vld [vmem:[%s1 + $0xd0] sm:$0xff]
        %v304 = vld [vmem:[%s1 + $0xd8] sm:$0xff]
        %v305 = vld [vmem:[%s1 + $0xe0] sm:$0xff]
        %v306 = vld [vmem:[%s1 + $0xe8] sm:$0xff]
        %v307 = vld [vmem:[%s1 + $0xf0] sm:$0xff]
        %v308 = vld [vmem:[%s1 + $0xf8] sm:$0xff]
        %v309 = vld [vmem:[%s2] sm:$0x1]
        %v311 = vlaneseq
        %v312 = vshrl.u32 %v311, 7
        %v313 = vsub.s32 0, %v312
        %v314 = vrot.slane %v309, %v313
        %316 = vmatprep.subr.mxu0 0.0
        %317 = vmatpush1.msra.mxu0 %v277
        %318 = vmatprep.subr.mxu0 0.0
        %319 = vmatpush1.msra.mxu0 %v278
        %320 = vmatprep.subr.mxu0 0.0
        %321 = vmatpush1.msra.mxu0 %v279
        %322 = vmatprep.subr.mxu0 0.0
        %323 = vmatpush1.msra.mxu0 %v280
        %324 = vmatprep.subr.mxu0 0.0
        %325 = vmatpush1.msra.mxu0 %v281
        %326 = vmatprep.subr.mxu0 0.0
        %327 = vmatpush1.msra.mxu0 %v282
        %328 = vmatprep.subr.mxu0 0.0
        %329 = vmatpush1.msra.mxu0 %v283
        %330 = vmatprep.subr.mxu0 0.0
        %331 = vmatpush1.msra.mxu0 %v284
        %332 = vmatprep.subr.mxu0 0.0
        %333 = vmatpush1.msra.mxu0 %v285
        %334 = vmatprep.subr.mxu0 0.0
        %335 = vmatpush1.msra.mxu0 %v286
        %336 = vmatprep.subr.mxu0 0.0
        %337 = vmatpush1.msra.mxu0 %v287
        %338 = vmatprep.subr.mxu0 0.0
        %339 = vmatpush1.msra.mxu0 %v288
        %340 = vmatprep.subr.mxu0 0.0
        %341 = vmatpush1.msra.mxu0 %v289
        %342 = vmatprep.subr.mxu0 0.0
        %343 = vmatpush1.msra.mxu0 %v290
        %344 = vmatprep.subr.mxu0 0.0
        %345 = vmatpush1.msra.mxu0 %v291
        %346 = vmatprep.subr.mxu0 0.0
        %347 = vmatpush1.msra.mxu0 %v292
        %348 = vmatprep.subr.mxu0 0.0
        %349 = vmatpush1.msra.mxu0 %v293
        %350 = vmatprep.subr.mxu0 0.0
        %351 = vmatpush1.msra.mxu0 %v294
        %352 = vmatprep.subr.mxu0 0.0
        %353 = vmatpush1.msra.mxu0 %v295
        %354 = vmatprep.subr.mxu0 0.0
        %355 = vmatpush1.msra.mxu0 %v296
        %356 = vmatprep.subr.mxu0 0.0
        %357 = vmatpush1.msra.mxu0 %v297
        %358 = vmatprep.subr.mxu0 0.0
        %359 = vmatpush1.msra.mxu0 %v298
        %360 = vmatprep.subr.mxu0 0.0
        %361 = vmatpush1.msra.mxu0 %v299
        %362 = vmatprep.subr.mxu0 0.0
        %363 = vmatpush1.msra.mxu0 %v300
        %364 = vmatprep.subr.mxu0 0.0
        %365 = vmatpush1.msra.mxu0 %v301
        %366 = vmatprep.subr.mxu0 0.0
        %367 = vmatpush1.msra.mxu0 %v302
        %368 = vmatprep.subr.mxu0 0.0
        %369 = vmatpush1.msra.mxu0 %v303
        %370 = vmatprep.subr.mxu0 0.0
        %371 = vmatpush1.msra.mxu0 %v304
        %372 = vmatprep.subr.mxu0 0.0
        %373 = vmatpush1.msra.mxu0 %v305
        %374 = vmatprep.subr.mxu0 0.0
        %375 = vmatpush1.msra.mxu0 %v306
        %376 = vmatprep.subr.mxu0 0.0
        %377 = vmatpush1.msra.mxu0 %v307
        %378 = vmatprep.subr.mxu0 0.0
        %379 = vmatpush1.msra.mxu0 %v308
        %380 = vmatprep.mubr.f32.mxu0 %v214
        %381 = vmatmul.mubr.f32.gmra.mrb[0].mxu0 %v213
        %v382 = vpop.f32.mrb[0].mxu0
        %v383 = vadd.f32 %v314, %v382
        %v384 = vpop.f32.mrb[0].mxu0
        %385 = vmatprep.mubr.f32.mxu0 %v216
        %386 = vmatmul.mubr.f32.gmra.mrb[0].mxu0 %v215
        %v387 = vpop.f32.mrb[0].mxu0
        %v388 = vadd.f32 %v314, %v387
        %v389 = vpop.f32.mrb[0].mxu0
        %390 = vmatprep.mubr.f32.mxu0 %v218
        %391 = vmatmul.mubr.f32.gmra.mrb[0].mxu0 %v217
        %v392 = vpop.f32.mrb[0].mxu0
        %v393 = vadd.f32 %v314, %v392
        %v394 = vpop.f32.mrb[0].mxu0
        %395 = vmatprep.mubr.f32.mxu0 %v220
        %396 = vmatmul.mubr.f32.gmra.mrb[0].mxu0 %v219
        %v397 = vpop.f32.mrb[0].mxu0
        %v398 = vadd.f32 %v314, %v397
        %v399 = vpop.f32.mrb[0].mxu0
        %400 = vmatprep.mubr.f32.mxu0 %v222
        %401 = vmatmul.mubr.f32.gmra.mrb[0].mxu0 %v221
        %v402 = vpop.f32.mrb[0].mxu0
        %v403 = vadd.f32 %v314, %v402
        %v404 = vpop.f32.mrb[0].mxu0
        %405 = vmatprep.mubr.f32.mxu0 %v224
        %406 = vmatmul.mubr.f32.gmra.mrb[0].mxu0 %v223
        %v407 = vpop.f32.mrb[0].mxu0
        %v408 = vadd.f32 %v314, %v407
        %v409 = vpop.f32.mrb[0].mxu0
        %410 = vmatprep.mubr.f32.mxu0 %v226
        %411 = vmatmul.mubr.f32.gmra.mrb[0].mxu0 %v225
        %v412 = vpop.f32.mrb[0].mxu0
        %v413 = vadd.f32 %v314, %v412
        %v414 = vpop.f32.mrb[0].mxu0
        %415 = vmatprep.mubr.f32.mxu0 %v228
        %416 = vmatmul.mubr.f32.gmra.mrb[0].mxu0 %v227
        %v417 = vpop.f32.mrb[0].mxu0
        %v418 = vadd.f32 %v314, %v417
        %v419 = vpop.f32.mrb[0].mxu0
        %420 = vmatprep.mubr.f32.mxu0 %v230
        %421 = vmatmul.mubr.f32.gmra.mrb[0].mxu0 %v229
        %v422 = vpop.f32.mrb[0].mxu0
        %v423 = vadd.f32 %v314, %v422
        %v424 = vpop.f32.mrb[0].mxu0
        %425 = vmatprep.mubr.f32.mxu0 %v232
        %426 = vmatmul.mubr.f32.gmra.mrb[0].mxu0 %v231
        %v427 = vpop.f32.mrb[0].mxu0
        %v428 = vadd.f32 %v314, %v427
        %v429 = vpop.f32.mrb[0].mxu0
        %430 = vmatprep.mubr.f32.mxu0 %v234
        %431 = vmatmul.mubr.f32.gmra.mrb[0].mxu0 %v233
        %v432 = vpop.f32.mrb[0].mxu0
        %v433 = vadd.f32 %v314, %v432
        %v434 = vpop.f32.mrb[0].mxu0
        %435 = vmatprep.mubr.f32.mxu0 %v236
        %436 = vmatmul.mubr.f32.gmra.mrb[0].mxu0 %v235
        %v437 = vpop.f32.mrb[0].mxu0
        %v438 = vadd.f32 %v314, %v437
        %v439 = vpop.f32.mrb[0].mxu0
        %440 = vmatprep.mubr.f32.mxu0 %v238
        %441 = vmatmul.mubr.f32.gmra.mrb[0].mxu0 %v237
        %v442 = vpop.f32.mrb[0].mxu0
        %v443 = vadd.f32 %v314, %v442
        %v444 = vpop.f32.mrb[0].mxu0
        %445 = vmatprep.mubr.f32.mxu0 %v240
        %446 = vmatmul.mubr.f32.gmra.mrb[0].mxu0 %v239
        %v447 = vpop.f32.mrb[0].mxu0
        %v448 = vadd.f32 %v314, %v447
        %v449 = vpop.f32.mrb[0].mxu0
        %450 = vmatprep.mubr.f32.mxu0 %v242
        %451 = vmatmul.mubr.f32.gmra.mrb[0].mxu0 %v241
        %v452 = vpop.f32.mrb[0].mxu0
        %v453 = vadd.f32 %v314, %v452
        %v454 = vpop.f32.mrb[0].mxu0
        %455 = vmatprep.mubr.f32.mxu0 %v244
        %456 = vmatmul.mubr.f32.gmra.mrb[0].mxu0 %v243
        %v457 = vpop.f32.mrb[0].mxu0
        %v458 = vadd.f32 %v314, %v457
        %v459 = vpop.f32.mrb[0].mxu0
        %460 = vmatprep.mubr.f32.mxu0 %v246
        %461 = vmatmul.mubr.f32.gmra.mrb[0].mxu0 %v245
        %v462 = vpop.f32.mrb[0].mxu0
        %v463 = vadd.f32 %v314, %v462
        %v464 = vpop.f32.mrb[0].mxu0
        %465 = vmatprep.mubr.f32.mxu0 %v248
        %466 = vmatmul.mubr.f32.gmra.mrb[0].mxu0 %v247
        %v467 = vpop.f32.mrb[0].mxu0
        %v468 = vadd.f32 %v314, %v467
        %v469 = vpop.f32.mrb[0].mxu0
        %470 = vmatprep.mubr.f32.mxu0 %v250
        %471 = vmatmul.mubr.f32.gmra.mrb[0].mxu0 %v249
        %v472 = vpop.f32.mrb[0].mxu0
        %v473 = vadd.f32 %v314, %v472
        %v474 = vpop.f32.mrb[0].mxu0
        %475 = vmatprep.mubr.f32.mxu0 %v252
        %476 = vmatmul.mubr.f32.gmra.mrb[0].mxu0 %v251
        %v477 = vpop.f32.mrb[0].mxu0
        %v478 = vadd.f32 %v314, %v477
        %v479 = vpop.f32.mrb[0].mxu0
        %480 = vmatprep.mubr.f32.mxu0 %v254
        %481 = vmatmul.mubr.f32.gmra.mrb[0].mxu0 %v253
        %v482 = vpop.f32.mrb[0].mxu0
        %v483 = vadd.f32 %v314, %v482
        %v484 = vpop.f32.mrb[0].mxu0
        %485 = vmatprep.mubr.f32.mxu0 %v256
        %486 = vmatmul.mubr.f32.gmra.mrb[0].mxu0 %v255
        %v487 = vpop.f32.mrb[0].mxu0
        %v488 = vadd.f32 %v314, %v487
        %v489 = vpop.f32.mrb[0].mxu0
        %490 = vmatprep.mubr.f32.mxu0 %v258
        %491 = vmatmul.mubr.f32.gmra.mrb[0].mxu0 %v257
        %v492 = vpop.f32.mrb[0].mxu0
        %v493 = vadd.f32 %v314, %v492
        %v494 = vpop.f32.mrb[0].mxu0
        %495 = vmatprep.mubr.f32.mxu0 %v260
        %496 = vmatmul.mubr.f32.gmra.mrb[0].mxu0 %v259
        %v497 = vpop.f32.mrb[0].mxu0
        %v498 = vadd.f32 %v314, %v497
        %v499 = vpop.f32.mrb[0].mxu0
        %500 = vmatprep.mubr.f32.mxu0 %v262
        %501 = vmatmul.mubr.f32.gmra.mrb[0].mxu0 %v261
        %v502 = vpop.f32.mrb[0].mxu0
        %v503 = vadd.f32 %v314, %v502
        %v504 = vpop.f32.mrb[0].mxu0
        %505 = vmatprep.mubr.f32.mxu0 %v264
        %506 = vmatmul.mubr.f32.gmra.mrb[0].mxu0 %v263
        %v507 = vpop.f32.mrb[0].mxu0
        %v508 = vadd.f32 %v314, %v507
        %v509 = vpop.f32.mrb[0].mxu0
        %510 = vmatprep.mubr.f32.mxu0 %v266
        %511 = vmatmul.mubr.f32.gmra.mrb[0].mxu0 %v265
        %v512 = vpop.f32.mrb[0].mxu0
        %v513 = vadd.f32 %v314, %v512
        %v514 = vpop.f32.mrb[0].mxu0
        %515 = vmatprep.mubr.f32.mxu0 %v268
        %516 = vmatmul.mubr.f32.gmra.mrb[0].mxu0 %v267
        %v517 = vpop.f32.mrb[0].mxu0
        %v518 = vadd.f32 %v314, %v517
        %v519 = vpop.f32.mrb[0].mxu0
        %520 = vmatprep.mubr.f32.mxu0 %v270
        %521 = vmatmul.mubr.f32.gmra.mrb[0].mxu0 %v269
        %v522 = vpop.f32.mrb[0].mxu0
        %v523 = vadd.f32 %v314, %v522
        %v524 = vpop.f32.mrb[0].mxu0
        %525 = vmatprep.mubr.f32.mxu0 %v272
        %526 = vmatmul.mubr.f32.gmra.mrb[0].mxu0 %v271
        %v527 = vpop.f32.mrb[0].mxu0
        %v528 = vadd.f32 %v314, %v527
        %v529 = vpop.f32.mrb[0].mxu0
        %530 = vmatprep.mubr.f32.mxu0 %v274
        %531 = vmatmul.mubr.f32.gmra.mrb[0].mxu0 %v273
        %v532 = vpop.f32.mrb[0].mxu0
        %v533 = vadd.f32 %v314, %v532
        %v534 = vpop.f32.mrb[0].mxu0
        %535 = vmatprep.mubr.f32.mxu0 %v276
        %536 = vmatmul.mubr.f32.gmra.mrb[0].mxu0 %v275
        %v537 = vpop.f32.mrb[0].mxu0
        %v538 = vadd.f32 %v314, %v537
        %v539 = vpop.f32.mrb[0].mxu0
        %540 = vdwg.mxu0
        %v541 = vld [vmem:[%s204] sm:$0xff]
        %v542 = vld [vmem:[%s204 + $0x8] sm:$0xff]
        %543 = vxpose.xlu0.b32.start [1/16] %v383, 128
        %544 = vxpose.xlu0.b32.cont [2/16] %v388, 128
        %545 = vxpose.xlu0.b32.cont [3/16] %v393, 128
        %546 = vxpose.xlu0.b32.cont [4/16] %v398, 128
        %547 = vxpose.xlu0.b32.cont [5/16] %v403, 128
        %548 = vxpose.xlu0.b32.cont [6/16] %v408, 128
        %549 = vxpose.xlu0.b32.cont [7/16] %v413, 128
        %550 = vxpose.xlu0.b32.cont [8/16] %v418, 128
        %551 = vxpose.xlu0.b32.cont [9/16] %v423, 128
        %552 = vxpose.xlu0.b32.cont [10/16] %v428, 128
        %553 = vxpose.xlu0.b32.cont [11/16] %v433, 128
        %554 = vxpose.xlu0.b32.cont [12/16] %v438, 128
        %555 = vxpose.xlu0.b32.cont [13/16] %v443, 128
        %556 = vxpose.xlu0.b32.cont [14/16] %v448, 128
        %557 = vxpose.xlu0.b32.cont [15/16] %v453, 128
        %558 = vxpose.xlu0.b32.end [16/16] %v458, 128
        %v559 = vpop.trf.xlu0
        %v560 = vpop.trf.xlu0
        %v561 = vpop.trf.xlu0
        %v562 = vpop.trf.xlu0
        %v563 = vpop.trf.xlu0
        %v564 = vpop.trf.xlu0
        %v565 = vpop.trf.xlu0
        %v566 = vpop.trf.xlu0
        %v567 = vpop.trf.xlu0
        %v568 = vpop.trf.xlu0
        %v569 = vpop.trf.xlu0
        %v570 = vpop.trf.xlu0
        %v571 = vpop.trf.xlu0
        %v572 = vpop.trf.xlu0
        %v573 = vpop.trf.xlu0
        %v574 = vpop.trf.xlu0
        %575 = vxpose.xlu0.b32.start [1/16] %v463, 128
        %576 = vxpose.xlu0.b32.cont [2/16] %v468, 128
        %577 = vxpose.xlu0.b32.cont [3/16] %v473, 128
        %578 = vxpose.xlu0.b32.cont [4/16] %v478, 128
        %579 = vxpose.xlu0.b32.cont [5/16] %v483, 128
        %580 = vxpose.xlu0.b32.cont [6/16] %v488, 128
        %581 = vxpose.xlu0.b32.cont [7/16] %v493, 128
        %582 = vxpose.xlu0.b32.cont [8/16] %v498, 128
        %583 = vxpose.xlu0.b32.cont [9/16] %v503, 128
        %584 = vxpose.xlu0.b32.cont [10/16] %v508, 128
        %585 = vxpose.xlu0.b32.cont [11/16] %v513, 128
        %586 = vxpose.xlu0.b32.cont [12/16] %v518, 128
        %587 = vxpose.xlu0.b32.cont [13/16] %v523, 128
        %588 = vxpose.xlu0.b32.cont [14/16] %v528, 128
        %589 = vxpose.xlu0.b32.cont [15/16] %v533, 128
        %590 = vxpose.xlu0.b32.end [16/16] %v538, 128
        %v591 = vpop.trf.xlu0
        %v592 = vpop.trf.xlu0
        %v593 = vpop.trf.xlu0
        %v594 = vpop.trf.xlu0
        %v595 = vpop.trf.xlu0
        %v596 = vpop.trf.xlu0
        %v597 = vpop.trf.xlu0
        %v598 = vpop.trf.xlu0
        %v599 = vpop.trf.xlu0
        %v600 = vpop.trf.xlu0
        %v601 = vpop.trf.xlu0
        %v602 = vpop.trf.xlu0
        %v603 = vpop.trf.xlu0
        %v604 = vpop.trf.xlu0
        %v605 = vpop.trf.xlu0
        %v606 = vpop.trf.xlu0
        %607 = vmatprep.subr.mxu0 %v214
        %608 = vmatpush1.msra.mxu0 %v213
        %609 = vmatprep.subr.mxu0 %v216
        %610 = vmatpush1.msra.mxu0 %v215
        %611 = vmatprep.subr.mxu0 %v218
        %612 = vmatpush1.msra.mxu0 %v217
        %613 = vmatprep.subr.mxu0 %v220
        %614 = vmatpush1.msra.mxu0 %v219
        %615 = vmatprep.subr.mxu0 %v222
        %616 = vmatpush1.msra.mxu0 %v221
        %617 = vmatprep.subr.mxu0 %v224
        %618 = vmatpush1.msra.mxu0 %v223
        %619 = vmatprep.subr.mxu0 %v226
        %620 = vmatpush1.msra.mxu0 %v225
        %621 = vmatprep.subr.mxu0 %v228
        %622 = vmatpush1.msra.mxu0 %v227
        %623 = vmatprep.subr.mxu0 %v230
        %624 = vmatpush1.msra.mxu0 %v229
        %625 = vmatprep.subr.mxu0 %v232
        %626 = vmatpush1.msra.mxu0 %v231
        %627 = vmatprep.subr.mxu0 %v234
        %628 = vmatpush1.msra.mxu0 %v233
        %629 = vmatprep.subr.mxu0 %v236
        %630 = vmatpush1.msra.mxu0 %v235
        %631 = vmatprep.subr.mxu0 %v238
        %632 = vmatpush1.msra.mxu0 %v237
        %633 = vmatprep.subr.mxu0 %v240
        %634 = vmatpush1.msra.mxu0 %v239
        %635 = vmatprep.subr.mxu0 %v242
        %636 = vmatpush1.msra.mxu0 %v241
        %637 = vmatprep.subr.mxu0 %v244
        %638 = vmatpush1.msra.mxu0 %v243
        %639 = vmatprep.subr.mxu0 %v246
        %640 = vmatpush1.msra.mxu0 %v245
        %641 = vmatprep.subr.mxu0 %v248
        %642 = vmatpush1.msra.mxu0 %v247
        %643 = vmatprep.subr.mxu0 %v250
        %644 = vmatpush1.msra.mxu0 %v249
        %645 = vmatprep.subr.mxu0 %v252
        %646 = vmatpush1.msra.mxu0 %v251
        %647 = vmatprep.subr.mxu0 %v254
        %648 = vmatpush1.msra.mxu0 %v253
        %649 = vmatprep.subr.mxu0 %v256
        %650 = vmatpush1.msra.mxu0 %v255
        %651 = vmatprep.subr.mxu0 %v258
        %652 = vmatpush1.msra.mxu0 %v257
        %653 = vmatprep.subr.mxu0 %v260
        %654 = vmatpush1.msra.mxu0 %v259
        %655 = vmatprep.subr.mxu0 %v262
        %656 = vmatpush1.msra.mxu0 %v261
        %657 = vmatprep.subr.mxu0 %v264
        %658 = vmatpush1.msra.mxu0 %v263
        %659 = vmatprep.subr.mxu0 %v266
        %660 = vmatpush1.msra.mxu0 %v265
        %661 = vmatprep.subr.mxu0 %v268
        %662 = vmatpush1.msra.mxu0 %v267
        %663 = vmatprep.subr.mxu0 %v270
        %664 = vmatpush1.msra.mxu0 %v269
        %665 = vmatprep.subr.mxu0 %v272
        %666 = vmatpush1.msra.mxu0 %v271
        %667 = vmatprep.subr.mxu0 %v274
        %668 = vmatpush1.msra.mxu0 %v273
        %669 = vmatprep.subr.mxu0 %v276
        %670 = vmatpush1.msra.mxu0 %v275
        %671 = vmatprep.mubr.f32.mxu0 %v591
        %672 = vmatmul.mubr.f32.gmra.mrb[0].mxu0 %v559
        %v673 = vpop.f32.mrb[0].mxu0
        %v674 = vadd.f32 0.0, %v673
        %v675 = vpop.f32.mrb[0].mxu0
        %v676 = vadd.f32 0.0, %v675
        %677 = vdwg.mxu0
        %v678 = vadd.f32 %v541, %v674
        %v679 = vadd.f32 %v542, %v676
        %680 = vst [vmem:[%s204] sm:$0xff] %v678
        %681 = vst [vmem:[%s204 + $0x8] sm:$0xff] %v679
        %s682 = sand.u32 %s110, 1
        %s683 = scalar_lea.sflag [#allocation4], %s682
        %s684 = sand.u32 %s110, 1
        %s685 = smul.addr %s684, 16
        %s686 = scalar_lea.vmem [#allocation5], %s685
        // Predicated region
        $region41: #{tpu_custom_call.1} parent=31 // pred_check
          %p687 = pneg %p120
        $region42: #{tpu_custom_call.1} parent=31 // pred_check_branch
          %689 = sbr.rel (%p687) target = $region44
        $region43: #{tpu_custom_call.1} parent=31 // pred_region
          %s691 = ssub.s32 256, 256
          %692 = vsyncadd %s683, %s691
          %s693 = smul.addr %s24, 2
          %s694 = smul.addr %s693, 128
          %s695 = scalar_lea.hbm %s3, %s694
          %s697 = sshll.u32 %s686, 4
          %s698 = int_to_ptr.vmem [resolvable:$true] %s697
          %700 = dma.vmem_to_hbm [thread:$0]  %s698, 256, %s695, %s683
        $region44: #{tpu_custom_call.1} parent=31 // pred_fallthru
          _
      $region32: #{tpu_custom_call.1} parent=5 // pred_fallthru
        _
      %p701 = scmp.le.s32.totalorder 2, %s15
      // Predicated region
      $region45: #{tpu_custom_call.1} parent=5 // pred_check
        %p702 = pneg %p701
      $region46: #{tpu_custom_call.1} parent=5 // pred_check_branch
        %704 = sbr.rel (%p702) target = $region48
      $region47: #{tpu_custom_call.1} parent=5 // pred_region
        %s705 = ssub.s32 %s15, 2
        // Predicated region
        $region49: #{tpu_custom_call.1} parent=47 // pred_check
          %p706 = pneg %p126
        $region50: #{tpu_custom_call.1} parent=47 // pred_check_branch
          %708 = sbr.rel (%p706) target = $region52
        $region51: #{tpu_custom_call.1} parent=47 // pred_region
          %s709 = sand.u32 %s111, 1
          %s710 = scalar_lea.sflag [#allocation4], %s709
          %s711 = sand.u32 %s111, 1
          %s712 = smul.addr %s711, 16
          %s713 = scalar_lea.vmem [#allocation5], %s712
          %714 = dma.done %s710, 256
        $region52: #{tpu_custom_call.1} parent=47 // pred_fallthru
          _
      $region48: #{tpu_custom_call.1} parent=5 // pred_fallthru
        _
    $region6: #{tpu_custom_call.1} parent=1 // loop_footer
      %s19 = sadd.s32 1, %s15
    $region7: #{tpu_custom_call.1} parent=1 // loop_footer_branch
      %14 = sbr.rel target = $region3
    $region8: #{tpu_custom_call.1} parent=1 // loop_exit
      _
    %715 = vsyncpa [#allocation3], 1
    %s716 = scalar_lea.sflag [#allocation3], 1
    %717 = vsyncpa %s716, 1
    %718 = vsyncpa [#allocation4], 1
    %s719 = scalar_lea.sflag [#allocation4], 1
    %720 = vsyncpa %s719, 1

</llo_original>
